<compile_context>
chip_gen: v7x
topology: tpu7x:2x2x1
jax: 0.10.0
libtpu: 0.0.40
codegen_flags: <defaults>
</compile_context>

<pallas_src>
import jax
import jax.numpy as jnp
from jax.experimental import pallas as pl
from jax.experimental.pallas import tpu as pltpu


_LANE_COLS = 1024   # lane-dense last dim (multiple of 128)
_TILE_ROWS = 512    # (512, 1024) f32 tile = 2 MiB per stream per grid step


def _diffuse_kernel(scale_ref, x_ref, noise_ref, o_ref):
    # scale_ref: SMEM f32[2] = [alpha_t, sigma_t]
    alpha_t = scale_ref[0]
    sigma_t = scale_ref[1]
    xf = x_ref[...].astype(jnp.float32)
    nf = noise_ref[...].astype(jnp.float32)
    o_ref[...] = (alpha_t * xf + sigma_t * nf).astype(o_ref.dtype)


def _to_slab(flat):
    """Reshape a flat 1-D array to a lane-dense (rows, 1024) slab (pad < 1024 elems)."""
    total = flat.shape[0]
    rows = pl.cdiv(total, _LANE_COLS)
    padded = rows * _LANE_COLS
    if padded != total:
        flat = jnp.pad(flat, (0, padded - total))
    return flat.reshape(rows, _LANE_COLS)


def _diffuse_slab(x2d, n2d, scale):
    rows, cols = x2d.shape
    # Single full-extent block for small inputs (block dim == array dim is always
    # legal); otherwise 512-row tiles with a ragged last block handled by Pallas.
    tile_rows = rows if rows <= _TILE_ROWS else _TILE_ROWS
    grid = (pl.cdiv(rows, tile_rows),)
    return pl.pallas_call(
        _diffuse_kernel,
        out_shape=jax.ShapeDtypeStruct((rows, cols), x2d.dtype),
        grid=grid,
        in_specs=[
            pl.BlockSpec(memory_space=pltpu.MemorySpace.SMEM),      # [alpha_t, sigma_t]
            pl.BlockSpec((tile_rows, cols), lambda i: (i, 0)),      # x tile
            pl.BlockSpec((tile_rows, cols), lambda i: (i, 0)),      # noise tile
        ],
        out_specs=pl.BlockSpec((tile_rows, cols), lambda i: (i, 0)),
        compiler_params=pltpu.CompilerParams(
            dimension_semantics=("parallel",),       # shard grid across cores on v7x
            vmem_limit_bytes=32 * 1024 * 1024,       # 3 streams x 2 bufs x 2 MiB = 12 MiB
        ),
    )(scale, x2d, n2d)


class Diffuser:
    """JAX/Pallas port of the PyTorch Diffuser module."""

    def __init__(self, num_timesteps=1000, alpha_start=0.1, alpha_end=0.9):
        self.num_timesteps = num_timesteps
        self.alphas = jnp.linspace(alpha_start, alpha_end, num_timesteps,
                                   dtype=jnp.float32)
        self.sigmas = jnp.sqrt(1.0 - self.alphas ** 2)

    def __call__(self, x, t, *, key=None, noise=None):
        # t may be a traced integer -> gather with jnp.take (no per-timestep recompile).
        alpha_t = jnp.take(self.alphas, t).reshape(()).astype(jnp.float32)
        sigma_t = jnp.take(self.sigmas, t).reshape(()).astype(jnp.float32)
        scale = jnp.stack([alpha_t, sigma_t])

        if noise is None:
            # torch.randn_like equivalent: i.i.d. standard normal in x's dtype.
            if key is None:
                key = jax.random.PRNGKey(0)
            noise = jax.random.normal(key, x.shape, dtype=x.dtype)

        orig_shape = x.shape
        total = x.size
        x2d = _to_slab(x.reshape(-1))
        n2d = _to_slab(noise.reshape(-1))
        out2d = _diffuse_slab(x2d, n2d, scale)
        return out2d.reshape(-1)[:total].reshape(orig_shape)


if __name__ == "__main__":
    key = jax.random.PRNGKey(0)
    kx, kt, kn, knd, kx2, kn2 = jax.random.split(key, 6)

    diffuser = Diffuser(num_timesteps=1000, alpha_start=0.1, alpha_end=0.9)

    # --- small NCHW input (primary example) ---------------------------------
    B, C, H, W = 2, 4, 16, 16
    x = jax.random.normal(kx, (B, C, H, W), dtype=jnp.float32)
    t = jax.random.randint(kt, (), 0, 1000)
    alpha_t = diffuser.alphas[t]
    sigma_t = diffuser.sigmas[t]

    # Default path: noise drawn inside the wrapper from a key -> exact reference check.
    out = jax.block_until_ready(diffuser(x, t, key=knd))
    ref_noise = jax.random.normal(knd, x.shape, dtype=x.dtype)
    ref = alpha_t * x + sigma_t * ref_noise
    assert out.shape == x.shape and out.dtype == x.dtype
    assert bool(jnp.all(jnp.isfinite(out)))
    assert jnp.allclose(out, ref, atol=1e-6, rtol=1e-6)

    # Explicit-noise path.
    noise = jax.random.normal(kn, (B, C, H, W), dtype=jnp.float32)
    out_det = jax.block_until_ready(diffuser(x, t, noise=noise))
    ref_det = alpha_t * x + sigma_t * noise
    assert jnp.allclose(out_det, ref_det, atol=1e-6, rtol=1e-6)

    # bf16 activations: compute in f32, cast back to bf16.
    x_bf = x.astype(jnp.bfloat16)
    n_bf = noise.astype(jnp.bfloat16)
    out_bf = jax.block_until_ready(diffuser(x_bf, t, noise=n_bf))
    ref_bf = (alpha_t * x_bf.astype(jnp.float32)
              + sigma_t * n_bf.astype(jnp.float32)).astype(jnp.bfloat16)
    assert out_bf.dtype == jnp.bfloat16
    assert jnp.allclose(out_bf.astype(jnp.float32), ref_bf.astype(jnp.float32),
                        atol=2e-2, rtol=2e-2)

    # Larger input: 1x3x512x512 -> 768 rows -> grid of 2 with a ragged last block.
    xb = jax.random.normal(kx2, (1, 3, 512, 512), dtype=jnp.float32)
    nb = jax.random.normal(kn2, (1, 3, 512, 512), dtype=jnp.float32)
    out_b = jax.block_until_ready(diffuser(xb, t, noise=nb))
    ref_b = alpha_t * xb + sigma_t * nb
    assert jnp.allclose(out_b, ref_b, atol=1e-6, rtol=1e-6)

    print("KERNEL_OK")
</pallas_src>

<mosaic_0001>
module attributes {stable_mosaic.version = 11 : i64} {
  func.func @_diffuse_kernel(%arg0: i32, %arg1: memref<2xf32, #tpu.memory_space<smem>>, %arg2: memref<2x1024xf32, #tpu.memory_space<vmem>>, %arg3: memref<2x1024xf32, #tpu.memory_space<vmem>>, %arg4: memref<2x1024xf32, #tpu.memory_space<vmem>>) attributes {dimension_semantics = [#tpu.dimension_semantics<parallel>], iteration_bounds = array<i64: 1>, scalar_prefetch = 0 : i64, scratch_operands = 0 : i64, tpu.core_type = #tpu.core_type<tc>, window_params = [{transform_indices = @transform_0, window_bounds = array<i64: 2>}, {transform_indices = @transform_1, window_bounds = array<i64: 2, 1024>}, {transform_indices = @transform_2, window_bounds = array<i64: 2, 1024>}, {transform_indices = @transform_3, window_bounds = array<i64: 2, 1024>}]} {
    %c0 = arith.constant 0 : index
    %0 = memref.load %arg1[%c0] : memref<2xf32, #tpu.memory_space<smem>>
    %c1 = arith.constant 1 : index
    %1 = memref.load %arg1[%c1] : memref<2xf32, #tpu.memory_space<smem>>
    %c0_0 = arith.constant 0 : index
    %c0_1 = arith.constant 0 : index
    %2 = vector.load %arg2[%c0_0, %c0_1] : memref<2x1024xf32, #tpu.memory_space<vmem>>, vector<2x1024xf32>
    %c0_2 = arith.constant 0 : index
    %c0_3 = arith.constant 0 : index
    %3 = vector.load %arg3[%c0_2, %c0_3] : memref<2x1024xf32, #tpu.memory_space<vmem>>, vector<2x1024xf32>
    %4 = vector.broadcast %0 : f32 to vector<2x1024xf32>
    %5 = arith.mulf %4, %2 : vector<2x1024xf32>
    %6 = vector.broadcast %1 : f32 to vector<2x1024xf32>
    %7 = arith.mulf %6, %3 : vector<2x1024xf32>
    %8 = arith.addf %5, %7 : vector<2x1024xf32>
    %c0_4 = arith.constant 0 : index
    %c0_5 = arith.constant 0 : index
    %9 = vector.load %arg4[%c0_4, %c0_5] : memref<2x1024xf32, #tpu.memory_space<vmem>>, vector<2x1024xf32>
    tpu.vector_store %arg4[%c0_4, %c0_5], %8 {strides = array<i32>} : memref<2x1024xf32, #tpu.memory_space<vmem>>, vector<2x1024xf32>,
    return
  }
  func.func @transform_0(%arg0: i32) -> i32 {
    %c0_i32 = arith.constant 0 : i32
    %c0_i32_0 = arith.constant 0 : i32
    return %c0_i32 : i32
  }
  func.func @transform_1(%arg0: i32) -> (i32, i32) {
    %c0_i32 = arith.constant 0 : i32
    %c0_i32_0 = arith.constant 0 : i32
    return %arg0, %c0_i32 : i32, i32
  }
  func.func @transform_2(%arg0: i32) -> (i32, i32) {
    %c0_i32 = arith.constant 0 : i32
    %c0_i32_0 = arith.constant 0 : i32
    return %arg0, %c0_i32 : i32, i32
  }
  func.func @transform_3(%arg0: i32) -> (i32, i32) {
    %c0_i32 = arith.constant 0 : i32
    %c0_i32_0 = arith.constant 0 : i32
    return %arg0, %c0_i32 : i32, i32
  }
}

</mosaic_0001>

<llo_original>
// kernel: tpu_custom_call.1
$region0: #{tpu_custom_call.1}
  #allocation0 [shape = 'u32[]', space=smem, size = 0x4, offset = 0x4, fixed_abs, tag = 'smem constant byte address 0x4 - core index']
  #allocation1 [shape = 'u32[144,128]{1,0:T(1,128)}', space=vmem, size = 0x12000, scoped, tag = 'internal scratch']
  %s0 = inlined_call_operand.hbm [shape: f32[2], index: 0, kind: input, shape index: {}]
  %s1 = inlined_call_operand.hbm [shape: f32[2,1024], index: 1, kind: input, shape index: {}]
  %s2 = inlined_call_operand.hbm [shape: f32[2,1024], index: 2, kind: input, shape index: {}]
  %s3 = inlined_call_operand.hbm [shape: f32[2,1024], index: 3, kind: output, shape index: {}]
  %s4 = sld [smem:[#allocation0]]
  $region34: #{tpu_custom_call.1} parent=0
    _
  %s6 = ssub.s32 1, %s4
  %s7 = scalar_select 0, %s6, %s4
  $region1: #{tpu_custom_call.1} parent=0
    #allocation2 [shape = 'u8[512]{0}', space=smem, size = 0x200, scoped, tag = 'input window, operand 0, single buffered']
    #allocation3 [shape = 's32[1]{0}', space=sflag, size = 0x4, scoped, tag = 'scoped memory for tpu_custom_call.1']
    #allocation4 [shape = 's32[1]{0}', space=sflag, size = 0x4, scoped, tag = 'scoped memory for tpu_custom_call.1']
    #allocation5 [shape = 's32[1]{0}', space=sflag, size = 0x4, scoped, tag = 'scoped memory for tpu_custom_call.1']
    #allocation6 [shape = 'u8[8192]{0}', space=vmem, size = 0x2000, scoped, tag = 'input window, operand 1, single buffered']
    #allocation7 [shape = 'u8[8192]{0}', space=vmem, size = 0x2000, scoped, tag = 'input window, operand 2, single buffered']
    #allocation8 [shape = 's32[1]{0}', space=sflag, size = 0x4, scoped, tag = 'scoped memory for tpu_custom_call.1']
    #allocation9 [shape = 'u8[8192]{0}', space=vmem, size = 0x2000, scoped, tag = 'output window, operand 0, single buffered']
    %8 = vsyncpa [#allocation5], 0
    %9 = vsyncpa [#allocation3], 0
    %10 = vsyncpa [#allocation8], 0
    %11 = vsyncpa [#allocation4], 0
    // Predicated region
    $region2: #{tpu_custom_call.1} parent=1 // pred_check
      _
    $region3: #{tpu_custom_call.1} parent=1 // pred_check_branch
      %13 = sbr.rel (0) target = $region5
    $region4: #{tpu_custom_call.1} parent=1 // pred_region
      %s15 = ssub.s32 16, 16
      %16 = vsyncadd [#allocation5], %s15
      %19 = dma.hbm_to_smem %s0, 16, [#allocation2], [#allocation5]
    $region5: #{tpu_custom_call.1} parent=1 // pred_fallthru
      _
    // Predicated region
    $region6: #{tpu_custom_call.1} parent=1 // pred_check
      _
    $region7: #{tpu_custom_call.1} parent=1 // pred_check_branch
      %21 = sbr.rel (0) target = $region9
    $region8: #{tpu_custom_call.1} parent=1 // pred_region
      %s23 = ssub.s32 256, 256
      %24 = vsyncadd [#allocation3], %s23
      %s26 = sshll.u32 [#allocation6], 4
      %s27 = int_to_ptr.vmem [resolvable:$true] %s26
      %29 = dma.hbm_to_vmem [thread:$0]  %s1, 256, %s27, [#allocation3]
    $region9: #{tpu_custom_call.1} parent=1 // pred_fallthru
      _
    // Predicated region
    $region10: #{tpu_custom_call.1} parent=1 // pred_check
      _
    $region11: #{tpu_custom_call.1} parent=1 // pred_check_branch
      %31 = sbr.rel (0) target = $region13
    $region12: #{tpu_custom_call.1} parent=1 // pred_region
      %s33 = ssub.s32 256, 256
      %34 = vsyncadd [#allocation8], %s33
      %s36 = sshll.u32 [#allocation7], 4
      %s37 = int_to_ptr.vmem [resolvable:$true] %s36
      %39 = dma.hbm_to_vmem [thread:$0]  %s2, 256, %s37, [#allocation8]
    $region13: #{tpu_custom_call.1} parent=1 // pred_fallthru
      _
    // Predicated region
    $region14: #{tpu_custom_call.1} parent=1 // pred_check
      _
    $region15: #{tpu_custom_call.1} parent=1 // pred_check_branch
      %41 = sbr.rel (0) target = $region17
    $region16: #{tpu_custom_call.1} parent=1 // pred_region
      %42 = dma.done [#allocation5], 16
    $region17: #{tpu_custom_call.1} parent=1 // pred_fallthru
      _
    // Predicated region
    $region18: #{tpu_custom_call.1} parent=1 // pred_check
      _
    $region19: #{tpu_custom_call.1} parent=1 // pred_check_branch
      %44 = sbr.rel (0) target = $region21
    $region20: #{tpu_custom_call.1} parent=1 // pred_region
      %45 = dma.done [#allocation3], 256
    $region21: #{tpu_custom_call.1} parent=1 // pred_fallthru
      _
    // Predicated region
    $region22: #{tpu_custom_call.1} parent=1 // pred_check
      _
    $region23: #{tpu_custom_call.1} parent=1 // pred_check_branch
      %47 = sbr.rel (0) target = $region25
    $region24: #{tpu_custom_call.1} parent=1 // pred_region
      %48 = dma.done [#allocation8], 256
    $region25: #{tpu_custom_call.1} parent=1 // pred_fallthru
      _
    %49 = sfence
    %s50 = sld [smem:[#allocation2]]
    %s51 = sld [smem:[#allocation2 + $0x1]]
    %v52 = vld [vmem:[#allocation6] sm:$0xff]
    %v53 = vld [vmem:[#allocation6 + $0x8] sm:$0xff]
    %v54 = vld [vmem:[#allocation7] sm:$0xff]
    %v55 = vld [vmem:[#allocation7 + $0x8] sm:$0xff]
    %v56 = vstv %s50
    %v57 = vmul.f32 %v56, %v52
    %v58 = vmul.f32 %v56, %v53
    %v59 = vstv %s51
    %v60 = vmul.f32 %v59, %v54
    %v61 = vmul.f32 %v59, %v55
    %v62 = vadd.f32 %v57, %v60
    %v63 = vadd.f32 %v58, %v61
    %64 = vst [vmem:[#allocation9] sm:$0xff] %v62
    %65 = vst [vmem:[#allocation9 + $0x8] sm:$0xff] %v63
    // Predicated region
    $region26: #{tpu_custom_call.1} parent=1 // pred_check
      _
    $region27: #{tpu_custom_call.1} parent=1 // pred_check_branch
      %67 = sbr.rel (0) target = $region29
    $region28: #{tpu_custom_call.1} parent=1 // pred_region
      %s69 = ssub.s32 256, 256
      %70 = vsyncadd [#allocation4], %s69
      %s72 = sshll.u32 [#allocation9], 4
      %s73 = int_to_ptr.vmem [resolvable:$true] %s72
      %75 = dma.vmem_to_hbm [thread:$0]  %s73, 256, %s3, [#allocation4]
    $region29: #{tpu_custom_call.1} parent=1 // pred_fallthru
      _
    // Predicated region
    $region30: #{tpu_custom_call.1} parent=1 // pred_check
      _
    $region31: #{tpu_custom_call.1} parent=1 // pred_check_branch
      %77 = sbr.rel (0) target = $region33
    $region32: #{tpu_custom_call.1} parent=1 // pred_region
      %78 = dma.done [#allocation4], 256
    $region33: #{tpu_custom_call.1} parent=1 // pred_fallthru
      _
    %79 = vsyncpa [#allocation3], 1
    %80 = vsyncpa [#allocation8], 1
    %81 = vsyncpa [#allocation4], 1
    %82 = vsyncpa [#allocation5], 1

</llo_original>
